<compile_context>
chip_gen: v7x
topology: tpu7x:2x2x1
jax: 0.10.0
libtpu: 0.0.40
codegen_flags: <defaults>
</compile_context>

<pallas_src>
import functools

import jax
import jax.numpy as jnp
import numpy as np
from jax import lax
from jax.experimental import pallas as pl
from jax.experimental.pallas import tpu as pltpu


def _round_up(x: int, m: int) -> int:
    return (x + m - 1) // m * m


def _cdiv(a: int, b: int) -> int:
    return -(-a // b)


def _tcn_kernel(x_hbm, w_ref, shift_ref, o_ref, xbuf, sem, *,
                stride, c_pad, k_taps, t_blk, lane_blk, halo_rows, unroll):
    """Fused temporal conv (K over T, 1 over V) + folded BatchNorm, halo-blocked.

    x_hbm     : (T_time * C_pad, M_pad) HBM slab; row (t*C_pad + c) = x[c, t, :]
    w_ref     : (C_out, K * C_pad)      conv weights with BN scale pre-folded
    shift_ref : (C_out, 1)              folded BN shift (f32)
    o_ref     : (t_blk, C_out, M_blk)   output tile (lane-dense in M)
    xbuf      : (2, halo_rows, M_blk)   manual double buffer for the halo window
    sem       : DMA semaphores, shape (2,)
    """
    mb = pl.program_id(0)
    tb = pl.program_id(1)
    num_tb = pl.num_programs(1)

    def halo_copy(tb_idx, slot):
        row0 = pl.multiple_of(tb_idx * (t_blk * stride * c_pad), c_pad)
        lane0 = pl.multiple_of(mb * lane_blk, lane_blk)
        return pltpu.make_async_copy(
            x_hbm.at[pl.ds(row0, halo_rows), pl.ds(lane0, lane_blk)],
            xbuf.at[slot],
            sem.at[slot])

    slot = tb & 1

    @pl.when(tb == 0)
    def _():                       # first t-step of this lane stripe: fetch current
        halo_copy(tb, slot).start()

    @pl.when(tb + 1 < num_tb)
    def _():                       # prefetch next halo window into the other slot
        halo_copy(tb + 1, 1 - slot).start()

    halo_copy(tb, slot).wait()

    w = w_ref[...]                                          # (C_out, K*C_pad) bf16
    c_out = o_ref.shape[1]
    # hoisted: JAX does not CSE broadcast_in_dim, so do it once per grid step
    shift_b = jnp.broadcast_to(shift_ref[...].astype(jnp.float32),
                               (c_out, lane_blk))

    xv = xbuf.at[slot]
    win = k_taps * c_pad

    def compute_one(t):
        # contiguous (K*C_pad)-row window; start is always a multiple of C_pad
        start = pl.multiple_of(t * (stride * c_pad), c_pad)
        x_win = xv[pl.ds(start, win), :]                            # (K*C_pad, M_blk)
        y = jnp.dot(w, x_win, preferred_element_type=jnp.float32)   # (C_out, M_blk)
        o_ref[t] = (y + shift_b).astype(o_ref.dtype)

    if t_blk <= 8:
        # short tile: static unroll -> static store indices, good LLO scheduling
        for t in range(t_blk):
            compute_one(t)
    else:
        # cap the unroll so a large K*C_pad window does not flip us spill-bound
        lax.fori_loop(0, t_blk, lambda t, c: (compute_one(t), c)[1], 0,
                      unroll=unroll)


def unit_tcn_forward(x_nctv, weight, bias, gamma, beta, run_mean, run_var,
                     *, stride=1, eps=1e-5, lane_block=256, t_block=32,
                     compute_dtype=jnp.bfloat16):
    """Forward of unit_tcn.  x_nctv: (N, C_in, T, V) NCHW like PyTorch."""
    N, C_in, T, V = x_nctv.shape
    C_out = weight.shape[0]
    K = weight.shape[2]
    pad = (K - 1) // 2
    T_out = (T + 2 * pad - K) // stride + 1

    # --- derived padded sizes ---
    itemsize = jnp.dtype(compute_dtype).itemsize
    sub = 8 * (4 // itemsize)                  # 8 for f32, 16 for bf16 (packed pairs)
    C_pad = _round_up(C_in, sub)

    M = N * V
    lane_block = min(lane_block, _round_up(M, 128))
    M_pad = _round_up(M, lane_block)
    grid_m = M_pad // lane_block

    t_blk = max(1, min(t_block, T_out))
    if grid_m == 1 and T_out > 1:
        # keep >= 2 grid steps so the output/DMA pipeline (and v7x cores) get work
        t_blk = min(t_blk, _cdiv(T_out, 2))
    T_out_pad = _round_up(T_out, t_blk)
    grid_t = T_out_pad // t_blk

    halo_t = (t_blk - 1) * stride + K          # input time steps per output tile
    halo_rows = halo_t * C_pad
    T_time = (T_out_pad - 1) * stride + K      # total padded input time steps

    # --- glue (plain JAX, fused by XLA): layout transform + BN folding ---
    # TODO(synk): keep activations in this (time*chan, M) slab layout between
    # stacked layers instead of round-tripping through NCHW each time.
    x = jnp.transpose(x_nctv, (2, 1, 0, 3)).reshape(T, C_in, M)
    back = max(T_time - T - pad, 0)
    x = jnp.pad(x, ((pad, back), (0, C_pad - C_in), (0, M_pad - M)))
    x = x[:T_time]                                          # exact temporal length
    x2 = x.reshape(T_time * C_pad, M_pad).astype(compute_dtype)

    scale = gamma / jnp.sqrt(run_var + eps)                               # (C_out,)
    shift = ((bias - run_mean) * scale + beta).reshape(C_out, 1)          # (C_out,1)
    shift = shift.astype(jnp.float32)
    # weights: (C_out, C_in, K, 1) -> (C_out, K, C_pad) -> (C_out, K*C_pad), scale folded
    w = jnp.transpose(weight[..., 0], (0, 2, 1))                          # (C_out,K,C_in)
    w = jnp.pad(w, ((0, 0), (0, 0), (0, C_pad - C_in)))
    w2 = (w * scale[:, None, None]).reshape(C_out, K * C_pad).astype(compute_dtype)

    out_dtype = x_nctv.dtype

    # VMEM budget: halo double buffer + pipelined weight/shift/output blocks.
    vmem_need = (2 * halo_rows * lane_block * itemsize
                 + 2 * C_out * K * C_pad * itemsize
                 + 2 * C_out * 128 * 4
                 + 2 * t_blk * C_out * lane_block * jnp.dtype(out_dtype).itemsize)
    vmem_limit = int(min(max(2 * vmem_need + (2 << 20), 16 << 20), 96 << 20))

    kernel = functools.partial(
        _tcn_kernel, stride=stride, c_pad=C_pad, k_taps=K, t_blk=t_blk,
        lane_blk=lane_block, halo_rows=halo_rows, unroll=8)

    out = pl.pallas_call(
        kernel,
        out_shape=jax.ShapeDtypeStruct((T_out_pad, C_out, M_pad), out_dtype),
        grid_spec=pltpu.PrefetchScalarGridSpec(
            num_scalar_prefetch=0,
            grid=(grid_m, grid_t),              # t innermost -> halo prefetch chain
            in_specs=[
                pl.BlockSpec(memory_space=pl.ANY),                     # x slab in HBM
                pl.BlockSpec((C_out, K * C_pad), lambda mb, tb: (0, 0)),
                pl.BlockSpec((C_out, 1), lambda mb, tb: (0, 0)),
            ],
            out_specs=pl.BlockSpec((t_blk, C_out, lane_block),
                                   lambda mb, tb: (tb, 0, mb)),
            scratch_shapes=[
                pltpu.VMEM((2, halo_rows, lane_block), compute_dtype),
                pltpu.SemaphoreType.DMA((2,)),
            ]),
        compiler_params=pltpu.CompilerParams(
            dimension_semantics=("parallel", "arbitrary"),
            vmem_limit_bytes=vmem_limit),
    )(x2, w2, shift)

    # (T_out_pad, C_out, M_pad) -> (N, C_out, T_out, V)
    out = out[:T_out, :, :M].reshape(T_out, C_out, N, V)
    return jnp.transpose(out, (2, 1, 0, 3))


def _reference(x_nctv, weight, bias, gamma, beta, run_mean, run_var,
               *, stride=1, eps=1e-5):
    """Pure-JAX f32 reference (mirrors PyTorch Conv2d + BatchNorm2d eval)."""
    K = weight.shape[2]
    pad = (K - 1) // 2
    y = lax.conv_general_dilated(
        x_nctv, weight, window_strides=(stride, 1),
        padding=((pad, pad), (0, 0)),
        dimension_numbers=("NCHW", "OIHW", "NCHW"),
    )
    y = y + bias.reshape(1, -1, 1, 1)
    y = (y - run_mean.reshape(1, -1, 1, 1)) / jnp.sqrt(
        run_var.reshape(1, -1, 1, 1) + eps)
    return y * gamma.reshape(1, -1, 1, 1) + beta.reshape(1, -1, 1, 1)


if __name__ == "__main__":
    # Small shapes consistent with the module: N=2, C_in=4, C_out=8, T=16, V=16, K=9
    N, C_in, C_out, T, V, K = 2, 4, 8, 16, 16, 9

    key = jax.random.PRNGKey(0)
    kx, kw = jax.random.split(key)

    x = jax.random.normal(kx, (N, C_in, T, V), jnp.float32)

    # conv_init: kaiming_normal_(mode='fan_out') -> std = sqrt(2/(C_out*K*1)); bias = 0
    w_std = float(np.sqrt(2.0 / (C_out * K * 1)))
    weight = jax.random.normal(kw, (C_out, C_in, K, 1), jnp.float32) * w_std
    bias = jnp.zeros((C_out,), jnp.float32)

    # bn_init(bn, 1): gamma = 1, beta = 0; fresh running stats mean=0, var=1
    gamma = jnp.ones((C_out,), jnp.float32)
    beta = jnp.zeros((C_out,), jnp.float32)
    run_mean = jnp.zeros((C_out,), jnp.float32)
    run_var = jnp.ones((C_out,), jnp.float32)

    # bf16 compute path (default): stride=1 (most layers) and stride=2 (l5/l8 tcn)
    for stride in (1, 2):
        fwd = jax.jit(functools.partial(unit_tcn_forward, stride=stride))
        y = jax.block_until_ready(
            fwd(x, weight, bias, gamma, beta, run_mean, run_var))
        y_ref = _reference(x, weight, bias, gamma, beta, run_mean, run_var,
                           stride=stride)
        np.testing.assert_allclose(np.asarray(y), np.asarray(y_ref),
                                   rtol=3e-2, atol=3e-2)

    # f32 compute path: exactness check of the halo-blocked kernel itself
    fwd32 = jax.jit(functools.partial(unit_tcn_forward, stride=1,
                                      compute_dtype=jnp.float32))
    y32 = jax.block_until_ready(
        fwd32(x, weight, bias, gamma, beta, run_mean, run_var))
    y_ref = _reference(x, weight, bias, gamma, beta, run_mean, run_var, stride=1)
    np.testing.assert_allclose(np.asarray(y32), np.asarray(y_ref),
                               rtol=5e-5, atol=5e-5)

    print("KERNEL_OK")
</pallas_src>

<mosaic_0001>
module attributes {stable_mosaic.version = 11 : i64} {
  func.func @_tcn_kernel(%arg0: i32, %arg1: i32, %arg2: memref<384x128xbf16, #tpu.memory_space<any>>, %arg3: memref<8x144xbf16, #tpu.memory_space<vmem>>, %arg4: memref<8x1xf32, #tpu.memory_space<vmem>>, %arg5: memref<8x8x128xf32, #tpu.memory_space<vmem>>, %arg6: memref<2x256x128xbf16, #tpu.memory_space<vmem>>, %arg7: memref<2x!tpu.dma_semaphore, #tpu.memory_space<semaphore_mem>>) attributes {dimension_semantics = [#tpu.dimension_semantics<parallel>, #tpu.dimension_semantics<arbitrary>], iteration_bounds = array<i64: 1, 2>, scalar_prefetch = 0 : i64, scratch_operands = 2 : i64, tpu.core_type = #tpu.core_type<tc>, window_params = [{}, {pipeline_mode = #tpu.pipeline_mode<synchronous>, transform_indices = @transform_1, window_bounds = array<i64: 8, 144>}, {pipeline_mode = #tpu.pipeline_mode<synchronous>, transform_indices = @transform_2, window_bounds = array<i64: 8, 1>}, {transform_indices = @transform_3, window_bounds = array<i64: 8, 8, 128>}]} {
    %c1_i32 = arith.constant 1 : i32
    %0 = arith.andi %arg1, %c1_i32 : i32
    %c0_i32 = arith.constant 0 : i32
    %1 = arith.cmpi eq, %arg1, %c0_i32 : i32
    %2 = arith.extui %1 : i1 to i32
    %c0_i32_0 = arith.constant 0 : i32
    %3 = arith.cmpi ne, %2, %c0_i32_0 : i32
    scf.if %3 {
      %c128_i32_58 = arith.constant 128 : i32
      %101 = arith.muli %arg1, %c128_i32_58 : i32
      %102 = tpu.assume_multiple %101, 16 : i32
      %c128_i32_59 = arith.constant 128 : i32
      %103 = arith.muli %arg0, %c128_i32_59 : i32
      %104 = tpu.assume_multiple %103, 128 : i32
      %105 = tpu.memref_slice %arg2[%102, %104] : memref<384x128xbf16, #tpu.memory_space<any>> -> memref<256x128xbf16, #tpu.memory_space<any>>
      %c0_i32_60 = arith.constant 0 : i32
      %c0_i32_61 = arith.constant 0 : i32
      %106 = tpu.memref_slice %arg6[%0, %c0_i32_60, %c0_i32_61] : memref<2x256x128xbf16, #tpu.memory_space<vmem>> -> memref<1x256x128xbf16, #tpu.memory_space<vmem>>
      %107 = tpu.memref_squeeze %106 : memref<1x256x128xbf16, #tpu.memory_space<vmem>> -> memref<256x128xbf16, #tpu.memory_space<vmem>>
      %108 = tpu.memref_slice %arg7[%0] : memref<2x!tpu.dma_semaphore, #tpu.memory_space<semaphore_mem>> -> memref<1x!tpu.dma_semaphore, #tpu.memory_space<semaphore_mem>>
      %109 = tpu.memref_squeeze %108 : memref<1x!tpu.dma_semaphore, #tpu.memory_space<semaphore_mem>> -> memref<!tpu.dma_semaphore, #tpu.memory_space<semaphore_mem>>
      tpu.enqueue_dma source(%105 : memref<256x128xbf16, #tpu.memory_space<any>>) target(%107 : memref<256x128xbf16, #tpu.memory_space<vmem>>) target_semaphore(%109 : memref<!tpu.dma_semaphore, #tpu.memory_space<semaphore_mem>>)
    } else {
    }
    %c1_i32_1 = arith.constant 1 : i32
    %4 = arith.addi %arg1, %c1_i32_1 : i32
    %c2_i32 = arith.constant 2 : i32
    %5 = arith.cmpi slt, %4, %c2_i32 : i32
    %6 = arith.extui %5 : i1 to i32
    %c0_i32_2 = arith.constant 0 : i32
    %7 = arith.cmpi ne, %6, %c0_i32_2 : i32
    scf.if %7 {
      %c1_i32_58 = arith.constant 1 : i32
      %101 = arith.addi %arg1, %c1_i32_58 : i32
      %c1_i32_59 = arith.constant 1 : i32
      %102 = arith.subi %c1_i32_59, %0 : i32
      %c128_i32_60 = arith.constant 128 : i32
      %103 = arith.muli %101, %c128_i32_60 : i32
      %104 = tpu.assume_multiple %103, 16 : i32
      %c128_i32_61 = arith.constant 128 : i32
      %105 = arith.muli %arg0, %c128_i32_61 : i32
      %106 = tpu.assume_multiple %105, 128 : i32
      %107 = tpu.memref_slice %arg2[%104, %106] : memref<384x128xbf16, #tpu.memory_space<any>> -> memref<256x128xbf16, #tpu.memory_space<any>>
      %c0_i32_62 = arith.constant 0 : i32
      %c0_i32_63 = arith.constant 0 : i32
      %108 = tpu.memref_slice %arg6[%102, %c0_i32_62, %c0_i32_63] : memref<2x256x128xbf16, #tpu.memory_space<vmem>> -> memref<1x256x128xbf16, #tpu.memory_space<vmem>>
      %109 = tpu.memref_squeeze %108 : memref<1x256x128xbf16, #tpu.memory_space<vmem>> -> memref<256x128xbf16, #tpu.memory_space<vmem>>
      %110 = tpu.memref_slice %arg7[%102] : memref<2x!tpu.dma_semaphore, #tpu.memory_space<semaphore_mem>> -> memref<1x!tpu.dma_semaphore, #tpu.memory_space<semaphore_mem>>
      %111 = tpu.memref_squeeze %110 : memref<1x!tpu.dma_semaphore, #tpu.memory_space<semaphore_mem>> -> memref<!tpu.dma_semaphore, #tpu.memory_space<semaphore_mem>>
      tpu.enqueue_dma source(%107 : memref<256x128xbf16, #tpu.memory_space<any>>) target(%109 : memref<256x128xbf16, #tpu.memory_space<vmem>>) target_semaphore(%111 : memref<!tpu.dma_semaphore, #tpu.memory_space<semaphore_mem>>)
    } else {
    }
    %c128_i32 = arith.constant 128 : i32
    %8 = arith.muli %arg1, %c128_i32 : i32
    %9 = tpu.assume_multiple %8, 16 : i32
    %c128_i32_3 = arith.constant 128 : i32
    %10 = arith.muli %arg0, %c128_i32_3 : i32
    %11 = tpu.assume_multiple %10, 128 : i32
    %12 = tpu.memref_slice %arg2[%9, %11] : memref<384x128xbf16, #tpu.memory_space<any>> -> memref<256x128xbf16, #tpu.memory_space<any>>
    %c0_i32_4 = arith.constant 0 : i32
    %c0_i32_5 = arith.constant 0 : i32
    %13 = tpu.memref_slice %arg6[%0, %c0_i32_4, %c0_i32_5] : memref<2x256x128xbf16, #tpu.memory_space<vmem>> -> memref<1x256x128xbf16, #tpu.memory_space<vmem>>
    %14 = tpu.memref_squeeze %13 : memref<1x256x128xbf16, #tpu.memory_space<vmem>> -> memref<256x128xbf16, #tpu.memory_space<vmem>>
    %15 = tpu.memref_slice %arg7[%0] : memref<2x!tpu.dma_semaphore, #tpu.memory_space<semaphore_mem>> -> memref<1x!tpu.dma_semaphore, #tpu.memory_space<semaphore_mem>>
    %16 = tpu.memref_squeeze %15 : memref<1x!tpu.dma_semaphore, #tpu.memory_space<semaphore_mem>> -> memref<!tpu.dma_semaphore, #tpu.memory_space<semaphore_mem>>
    tpu.wait_dma2 semaphore(%16 : memref<!tpu.dma_semaphore, #tpu.memory_space<semaphore_mem>>) src(%12 : memref<256x128xbf16, #tpu.memory_space<any>>) dst(%14 : memref<256x128xbf16, #tpu.memory_space<vmem>>)
    %c0 = arith.constant 0 : index
    %c0_6 = arith.constant 0 : index
    %17 = vector.load %arg3[%c0, %c0_6] : memref<8x144xbf16, #tpu.memory_space<vmem>>, vector<8x144xbf16>
    %c0_7 = arith.constant 0 : index
    %c0_8 = arith.constant 0 : index
    %18 = vector.load %arg4[%c0_7, %c0_8] : memref<8x1xf32, #tpu.memory_space<vmem>>, vector<8x1xf32>
    %19 = vector.shape_cast %18 : vector<8x1xf32> to vector<8x1xf32>
    %20 = vector.broadcast %19 : vector<8x1xf32> to vector<8x128xf32>
    %c0_i32_9 = arith.constant 0 : i32
    %21 = tpu.assume_multiple %c0_i32_9, 16 : i32
    %c0_i32_10 = arith.constant 0 : i32
    %c0_i32_11 = arith.constant 0 : i32
    %22 = tpu.memref_slice %arg6[%0, %c0_i32_10, %c0_i32_11] : memref<2x256x128xbf16, #tpu.memory_space<vmem>> -> memref<1x256x128xbf16, #tpu.memory_space<vmem>>
    %23 = tpu.memref_squeeze %22 : memref<1x256x128xbf16, #tpu.memory_space<vmem>> -> memref<256x128xbf16, #tpu.memory_space<vmem>>
    %24 = arith.index_cast %21 : i32 to index
    %c0_12 = arith.constant 0 : index
    %25 = vector.load %23[%24, %c0_12] : memref<256x128xbf16, #tpu.memory_space<vmem>>, vector<144x128xbf16>
    %cst = arith.constant dense<0.000000e+00> : vector<8x128xf32>
    %26 = tpu.matmul %17, %25, %cst {dimension_numbers = #tpu.dot_dimension_numbers<[1], [0], [0], [1], [0, 0, 1, 1], [], []>} : vector<8x144xbf16>, vector<144x128xbf16>, vector<8x128xf32> -> vector<8x128xf32>
    %27 = arith.addf %26, %20 : vector<8x128xf32>
    %c0_13 = arith.constant 0 : index
    %c0_14 = arith.constant 0 : index
    %c0_15 = arith.constant 0 : index
    %28 = vector.load %arg5[%c0_13, %c0_14, %c0_15] : memref<8x8x128xf32, #tpu.memory_space<vmem>>, vector<1x8x128xf32>
    %29 = vector.shape_cast %28 : vector<1x8x128xf32> to vector<8x128xf32>
    %30 = vector.shape_cast %27 : vector<8x128xf32> to vector<1x8x128xf32>
    tpu.vector_store %arg5[%c0_13, %c0_14, %c0_15], %30 {strides = array<i32>} : memref<8x8x128xf32, #tpu.memory_space<vmem>>, vector<1x8x128xf32>,
    %c16_i32 = arith.constant 16 : i32
    %31 = tpu.assume_multiple %c16_i32, 16 : i32
    %c0_i32_16 = arith.constant 0 : i32
    %c0_i32_17 = arith.constant 0 : i32
    %32 = tpu.memref_slice %arg6[%0, %c0_i32_16, %c0_i32_17] : memref<2x256x128xbf16, #tpu.memory_space<vmem>> -> memref<1x256x128xbf16, #tpu.memory_space<vmem>>
    %33 = tpu.memref_squeeze %32 : memref<1x256x128xbf16, #tpu.memory_space<vmem>> -> memref<256x128xbf16, #tpu.memory_space<vmem>>
    %34 = arith.index_cast %31 : i32 to index
    %c0_18 = arith.constant 0 : index
    %35 = vector.load %33[%34, %c0_18] : memref<256x128xbf16, #tpu.memory_space<vmem>>, vector<144x128xbf16>
    %cst_19 = arith.constant dense<0.000000e+00> : vector<8x128xf32>
    %36 = tpu.matmul %17, %35, %cst_19 {dimension_numbers = #tpu.dot_dimension_numbers<[1], [0], [0], [1], [0, 0, 1, 1], [], []>} : vector<8x144xbf16>, vector<144x128xbf16>, vector<8x128xf32> -> vector<8x128xf32>
    %37 = arith.addf %36, %20 : vector<8x128xf32>
    %c1 = arith.constant 1 : index
    %c0_20 = arith.constant 0 : index
    %c0_21 = arith.constant 0 : index
    %38 = vector.load %arg5[%c1, %c0_20, %c0_21] : memref<8x8x128xf32, #tpu.memory_space<vmem>>, vector<1x8x128xf32>
    %39 = vector.shape_cast %38 : vector<1x8x128xf32> to vector<8x128xf32>
    %40 = vector.shape_cast %37 : vector<8x128xf32> to vector<1x8x128xf32>
    tpu.vector_store %arg5[%c1, %c0_20, %c0_21], %40 {strides = array<i32>} : memref<8x8x128xf32, #tpu.memory_space<vmem>>, vector<1x8x128xf32>,
    %c32_i32 = arith.constant 32 : i32
    %41 = tpu.assume_multiple %c32_i32, 16 : i32
    %c0_i32_22 = arith.constant 0 : i32
    %c0_i32_23 = arith.constant 0 : i32
    %42 = tpu.memref_slice %arg6[%0, %c0_i32_22, %c0_i32_23] : memref<2x256x128xbf16, #tpu.memory_space<vmem>> -> memref<1x256x128xbf16, #tpu.memory_space<vmem>>
    %43 = tpu.memref_squeeze %42 : memref<1x256x128xbf16, #tpu.memory_space<vmem>> -> memref<256x128xbf16, #tpu.memory_space<vmem>>
    %44 = arith.index_cast %41 : i32 to index
    %c0_24 = arith.constant 0 : index
    %45 = vector.load %43[%44, %c0_24] : memref<256x128xbf16, #tpu.memory_space<vmem>>, vector<144x128xbf16>
    %cst_25 = arith.constant dense<0.000000e+00> : vector<8x128xf32>
    %46 = tpu.matmul %17, %45, %cst_25 {dimension_numbers = #tpu.dot_dimension_numbers<[1], [0], [0], [1], [0, 0, 1, 1], [], []>} : vector<8x144xbf16>, vector<144x128xbf16>, vector<8x128xf32> -> vector<8x128xf32>
    %47 = arith.addf %46, %20 : vector<8x128xf32>
    %c2 = arith.constant 2 : index
    %c0_26 = arith.constant 0 : index
    %c0_27 = arith.constant 0 : index
    %48 = vector.load %arg5[%c2, %c0_26, %c0_27] : memref<8x8x128xf32, #tpu.memory_space<vmem>>, vector<1x8x128xf32>
    %49 = vector.shape_cast %48 : vector<1x8x128xf32> to vector<8x128xf32>
    %50 = vector.shape_cast %47 : vector<8x128xf32> to vector<1x8x128xf32>
    tpu.vector_store %arg5[%c2, %c0_26, %c0_27], %50 {strides = array<i32>} : memref<8x8x128xf32, #tpu.memory_space<vmem>>, vector<1x8x128xf32>,
    %c48_i32 = arith.constant 48 : i32
    %51 = tpu.assume_multiple %c48_i32, 16 : i32
    %c0_i32_28 = arith.constant 0 : i32
    %c0_i32_29 = arith.constant 0 : i32
    %52 = tpu.memref_slice %arg6[%0, %c0_i32_28, %c0_i32_29] : memref<2x256x128xbf16, #tpu.memory_space<vmem>> -> memref<1x256x128xbf16, #tpu.memory_space<vmem>>
    %53 = tpu.memref_squeeze %52 : memref<1x256x128xbf16, #tpu.memory_space<vmem>> -> memref<256x128xbf16, #tpu.memory_space<vmem>>
    %54 = arith.index_cast %51 : i32 to index
    %c0_30 = arith.constant 0 : index
    %55 = vector.load %53[%54, %c0_30] : memref<256x128xbf16, #tpu.memory_space<vmem>>, vector<144x128xbf16>
    %cst_31 = arith.constant dense<0.000000e+00> : vector<8x128xf32>
    %56 = tpu.matmul %17, %55, %cst_31 {dimension_numbers = #tpu.dot_dimension_numbers<[1], [0], [0], [1], [0, 0, 1, 1], [], []>} : vector<8x144xbf16>, vector<144x128xbf16>, vector<8x128xf32> -> vector<8x128xf32>
    %57 = arith.addf %56, %20 : vector<8x128xf32>
    %c3 = arith.constant 3 : index
    %c0_32 = arith.constant 0 : index
    %c0_33 = arith.constant 0 : index
    %58 = vector.load %arg5[%c3, %c0_32, %c0_33] : memref<8x8x128xf32, #tpu.memory_space<vmem>>, vector<1x8x128xf32>
    %59 = vector.shape_cast %58 : vector<1x8x128xf32> to vector<8x128xf32>
    %60 = vector.shape_cast %57 : vector<8x128xf32> to vector<1x8x128xf32>
    tpu.vector_store %arg5[%c3, %c0_32, %c0_33], %60 {strides = array<i32>} : memref<8x8x128xf32, #tpu.memory_space<vmem>>, vector<1x8x128xf32>,
    %c64_i32 = arith.constant 64 : i32
    %61 = tpu.assume_multiple %c64_i32, 16 : i32
    %c0_i32_34 = arith.constant 0 : i32
    %c0_i32_35 = arith.constant 0 : i32
    %62 = tpu.memref_slice %arg6[%0, %c0_i32_34, %c0_i32_35] : memref<2x256x128xbf16, #tpu.memory_space<vmem>> -> memref<1x256x128xbf16, #tpu.memory_space<vmem>>
    %63 = tpu.memref_squeeze %62 : memref<1x256x128xbf16, #tpu.memory_space<vmem>> -> memref<256x128xbf16, #tpu.memory_space<vmem>>
    %64 = arith.index_cast %61 : i32 to index
    %c0_36 = arith.constant 0 : index
    %65 = vector.load %63[%64, %c0_36] : memref<256x128xbf16, #tpu.memory_space<vmem>>, vector<144x128xbf16>
    %cst_37 = arith.constant dense<0.000000e+00> : vector<8x128xf32>
    %66 = tpu.matmul %17, %65, %cst_37 {dimension_numbers = #tpu.dot_dimension_numbers<[1], [0], [0], [1], [0, 0, 1, 1], [], []>} : vector<8x144xbf16>, vector<144x128xbf16>, vector<8x128xf32> -> vector<8x128xf32>
    %67 = arith.addf %66, %20 : vector<8x128xf32>
    %c4 = arith.constant 4 : index
    %c0_38 = arith.constant 0 : index
    %c0_39 = arith.constant 0 : index
    %68 = vector.load %arg5[%c4, %c0_38, %c0_39] : memref<8x8x128xf32, #tpu.memory_space<vmem>>, vector<1x8x128xf32>
    %69 = vector.shape_cast %68 : vector<1x8x128xf32> to vector<8x128xf32>
    %70 = vector.shape_cast %67 : vector<8x128xf32> to vector<1x8x128xf32>
    tpu.vector_store %arg5[%c4, %c0_38, %c0_39], %70 {strides = array<i32>} : memref<8x8x128xf32, #tpu.memory_space<vmem>>, vector<1x8x128xf32>,
    %c80_i32 = arith.constant 80 : i32
    %71 = tpu.assume_multiple %c80_i32, 16 : i32
    %c0_i32_40 = arith.constant 0 : i32
    %c0_i32_41 = arith.constant 0 : i32
    %72 = tpu.memref_slice %arg6[%0, %c0_i32_40, %c0_i32_41] : memref<2x256x128xbf16, #tpu.memory_space<vmem>> -> memref<1x256x128xbf16, #tpu.memory_space<vmem>>
    %73 = tpu.memref_squeeze %72 : memref<1x256x128xbf16, #tpu.memory_space<vmem>> -> memref<256x128xbf16, #tpu.memory_space<vmem>>
    %74 = arith.index_cast %71 : i32 to index
    %c0_42 = arith.constant 0 : index
    %75 = vector.load %73[%74, %c0_42] : memref<256x128xbf16, #tpu.memory_space<vmem>>, vector<144x128xbf16>
    %cst_43 = arith.constant dense<0.000000e+00> : vector<8x128xf32>
    %76 = tpu.matmul %17, %75, %cst_43 {dimension_numbers = #tpu.dot_dimension_numbers<[1], [0], [0], [1], [0, 0, 1, 1], [], []>} : vector<8x144xbf16>, vector<144x128xbf16>, vector<8x128xf32> -> vector<8x128xf32>
    %77 = arith.addf %76, %20 : vector<8x128xf32>
    %c5 = arith.constant 5 : index
    %c0_44 = arith.constant 0 : index
    %c0_45 = arith.constant 0 : index
    %78 = vector.load %arg5[%c5, %c0_44, %c0_45] : memref<8x8x128xf32, #tpu.memory_space<vmem>>, vector<1x8x128xf32>
    %79 = vector.shape_cast %78 : vector<1x8x128xf32> to vector<8x128xf32>
    %80 = vector.shape_cast %77 : vector<8x128xf32> to vector<1x8x128xf32>
    tpu.vector_store %arg5[%c5, %c0_44, %c0_45], %80 {strides = array<i32>} : memref<8x8x128xf32, #tpu.memory_space<vmem>>, vector<1x8x128xf32>,
    %c96_i32 = arith.constant 96 : i32
    %81 = tpu.assume_multiple %c96_i32, 16 : i32
    %c0_i32_46 = arith.constant 0 : i32
    %c0_i32_47 = arith.constant 0 : i32
    %82 = tpu.memref_slice %arg6[%0, %c0_i32_46, %c0_i32_47] : memref<2x256x128xbf16, #tpu.memory_space<vmem>> -> memref<1x256x128xbf16, #tpu.memory_space<vmem>>
    %83 = tpu.memref_squeeze %82 : memref<1x256x128xbf16, #tpu.memory_space<vmem>> -> memref<256x128xbf16, #tpu.memory_space<vmem>>
    %84 = arith.index_cast %81 : i32 to index
    %c0_48 = arith.constant 0 : index
    %85 = vector.load %83[%84, %c0_48] : memref<256x128xbf16, #tpu.memory_space<vmem>>, vector<144x128xbf16>
    %cst_49 = arith.constant dense<0.000000e+00> : vector<8x128xf32>
    %86 = tpu.matmul %17, %85, %cst_49 {dimension_numbers = #tpu.dot_dimension_numbers<[1], [0], [0], [1], [0, 0, 1, 1], [], []>} : vector<8x144xbf16>, vector<144x128xbf16>, vector<8x128xf32> -> vector<8x128xf32>
    %87 = arith.addf %86, %20 : vector<8x128xf32>
    %c6 = arith.constant 6 : index
    %c0_50 = arith.constant 0 : index
    %c0_51 = arith.constant 0 : index
    %88 = vector.load %arg5[%c6, %c0_50, %c0_51] : memref<8x8x128xf32, #tpu.memory_space<vmem>>, vector<1x8x128xf32>
    %89 = vector.shape_cast %88 : vector<1x8x128xf32> to vector<8x128xf32>
    %90 = vector.shape_cast %87 : vector<8x128xf32> to vector<1x8x128xf32>
    tpu.vector_store %arg5[%c6, %c0_50, %c0_51], %90 {strides = array<i32>} : memref<8x8x128xf32, #tpu.memory_space<vmem>>, vector<1x8x128xf32>,
    %c112_i32 = arith.constant 112 : i32
    %91 = tpu.assume_multiple %c112_i32, 16 : i32
    %c0_i32_52 = arith.constant 0 : i32
    %c0_i32_53 = arith.constant 0 : i32
    %92 = tpu.memref_slice %arg6[%0, %c0_i32_52, %c0_i32_53] : memref<2x256x128xbf16, #tpu.memory_space<vmem>> -> memref<1x256x128xbf16, #tpu.memory_space<vmem>>
    %93 = tpu.memref_squeeze %92 : memref<1x256x128xbf16, #tpu.memory_space<vmem>> -> memref<256x128xbf16, #tpu.memory_space<vmem>>
    %94 = arith.index_cast %91 : i32 to index
    %c0_54 = arith.constant 0 : index
    %95 = vector.load %93[%94, %c0_54] : memref<256x128xbf16, #tpu.memory_space<vmem>>, vector<144x128xbf16>
    %cst_55 = arith.constant dense<0.000000e+00> : vector<8x128xf32>
    %96 = tpu.matmul %17, %95, %cst_55 {dimension_numbers = #tpu.dot_dimension_numbers<[1], [0], [0], [1], [0, 0, 1, 1], [], []>} : vector<8x144xbf16>, vector<144x128xbf16>, vector<8x128xf32> -> vector<8x128xf32>
    %97 = arith.addf %96, %20 : vector<8x128xf32>
    %c7 = arith.constant 7 : index
    %c0_56 = arith.constant 0 : index
    %c0_57 = arith.constant 0 : index
    %98 = vector.load %arg5[%c7, %c0_56, %c0_57] : memref<8x8x128xf32, #tpu.memory_space<vmem>>, vector<1x8x128xf32>
    %99 = vector.shape_cast %98 : vector<1x8x128xf32> to vector<8x128xf32>
    %100 = vector.shape_cast %97 : vector<8x128xf32> to vector<1x8x128xf32>
    tpu.vector_store %arg5[%c7, %c0_56, %c0_57], %100 {strides = array<i32>} : memref<8x8x128xf32, #tpu.memory_space<vmem>>, vector<1x8x128xf32>,
    return
  }
  func.func @transform_1(%arg0: i32, %arg1: i32) -> (i32, i32) {
    %c0_i32 = arith.constant 0 : i32
    %c0_i32_0 = arith.constant 0 : i32
    %c0_i32_1 = arith.constant 0 : i32
    return %c0_i32, %c0_i32_0 : i32, i32
  }
  func.func @transform_2(%arg0: i32, %arg1: i32) -> (i32, i32) {
    %c0_i32 = arith.constant 0 : i32
    %c0_i32_0 = arith.constant 0 : i32
    %c0_i32_1 = arith.constant 0 : i32
    return %c0_i32, %c0_i32_0 : i32, i32
  }
  func.func @transform_3(%arg0: i32, %arg1: i32) -> (i32, i32, i32) {
    %c0_i32 = arith.constant 0 : i32
    %c0_i32_0 = arith.constant 0 : i32
    return %arg1, %c0_i32, %arg0 : i32, i32, i32
  }
}

</mosaic_0001>

<llo_original>
// kernel: unit_tcn_forward.1
$region0: #{unit_tcn_forward.1}
  #allocation0 [shape = 'u32[]', space=smem, size = 0x4, offset = 0x4, fixed_abs, tag = 'smem constant byte address 0x4 - core index']
  #allocation1 [shape = 'u32[144,128]{1,0:T(1,128)}', space=vmem, size = 0x12000, scoped, tag = 'internal scratch']
  #allocation2 [shape = 'bf16[2,256,128]{2,1,0:T(16,128)(2,1)}', space=vmem, size = 0x20000, scoped, tag = 'scratch operand']
  #allocation3 [shape = 's32[2]{0}', space=sflag, size = 0x8, scoped, tag = 'scratch operand']
  #allocation4 [shape = 's32[]', space=sflag, size = 0x4, offset = 0, fixed_abs, tag = 'sflag constant byte address 0x0 - dummy sync flag']
  #allocation5 [shape = 's32[]', space=sflag, size = 0x4, offset = 0, fixed_abs, tag = 'sflag constant byte address 0x0 - dummy sync flag']
  %s0 = inlined_call_operand.vmem [shape: bf16[384,128], index: 0, kind: input, shape index: {}]
  %s1 = inlined_call_operand.vmem [shape: bf16[8,144], index: 1, kind: input, shape index: {}]
  %s2 = inlined_call_operand.vmem [shape: f32[8,1], index: 2, kind: input, shape index: {}]
  %s3 = inlined_call_operand.vmem [shape: f32[16,8,128], index: 3, kind: output, shape index: {}]
  %s4 = sld [smem:[#allocation0]]
  $region117: #{unit_tcn_forward.1} parent=0
    _
  %s6 = ssub.s32 1, %s4
  %s7 = scalar_select 0, %s6, %s4
  loop: start=0, step=1, limit=4
  $region2: #{unit_tcn_forward.1} parent=0 // loop_pre_header
    _
  $region3: #{unit_tcn_forward.1} parent=0 // loop_header
    %s9 = sphi 0, %s13
    %p10 = scmp.ge.s32.totalorder %s9, 4
    %s16 = sphi 0, %s28
    %s17 = sphi 0, %s24
    %s18 = sphi 0, %s16
    %s19 = sphi 0, %s17
    %s20 = sphi 0, %s18
    %s21 = sphi 0, %s19
    %s29 = sphi 0, %s29
    %s31 = sphi 0, %s29
    %s32 = sphi 0, %s31
    %s46 = sphi 0, %s32
    %s50 = sphi 0, %s50
    %s52 = sphi 0, %s50
    %s53 = sphi 0, %s52
    %s67 = sphi 0, %s53
    %s75 = sphi 0, %s77
    %s78 = sphi 0, %s75
    %s79 = sphi 0, %s78
    %s95 = sphi 0, %s79
  $region4: #{unit_tcn_forward.1} parent=0 // loop_header_branch
    %12 = sbr.rel (%p10) target = $region8
  $region5: #{unit_tcn_forward.1} parent=0 // loop_body
    %s14 = ssub.s32 %s9, 1
    %s15 = ssub.s32 %s9, 2
    %s22 = sadd.s32 1, %s17
    %p23 = scmp.ge.s32.totalorder %s22, 2
    %s24 = scalar_select %p23, 0, %s22
    %s25 = sadd.s32 1, %s16
    %s26 = scalar_select %p23, %s25, %s16
    %p27 = scmp.ge.s32.totalorder %s26, 1
    %s28 = scalar_select %p27, 0, %s26
    %s30 = sadd.s32 %s29, 1
    %p33 = scmp.eq.s32.totalorder %s9, 1
    %p34 = scmp.ne.s32.totalorder %s29, %s31
    %p35 = scmp.eq.s32.totalorder %s9, 0
    %p36 = por %p34, %p35
    %p37 = scmp.ne.s32.totalorder %s29, %s31
    %p38 = scmp.eq.s32.totalorder %s14, 1
    %p39 = por %p37, %p38
    %p40 = scmp.ne.s32.totalorder %s31, %s32
    %p41 = scmp.eq.s32.totalorder %s14, 0
    %p42 = por %p40, %p41
    %p43 = scmp.ne.s32.totalorder %s31, %s32
    %p44 = scmp.eq.s32.totalorder %s15, 1
    %p45 = por %p43, %p44
    %p47 = scmp.ne.s32.totalorder %s32, %s46
    %p48 = scmp.eq.s32.totalorder %s15, 0
    %p49 = por %p47, %p48
    %s51 = sadd.s32 %s50, 1
    %p54 = scmp.eq.s32.totalorder %s9, 1
    %p55 = scmp.ne.s32.totalorder %s50, %s52
    %p56 = scmp.eq.s32.totalorder %s9, 0
    %p57 = por %p55, %p56
    %p58 = scmp.ne.s32.totalorder %s50, %s52
    %p59 = scmp.eq.s32.totalorder %s14, 1
    %p60 = por %p58, %p59
    %p61 = scmp.ne.s32.totalorder %s52, %s53
    %p62 = scmp.eq.s32.totalorder %s14, 0
    %p63 = por %p61, %p62
    %p64 = scmp.ne.s32.totalorder %s52, %s53
    %p65 = scmp.eq.s32.totalorder %s15, 1
    %p66 = por %p64, %p65
    %p68 = scmp.ne.s32.totalorder %s53, %s67
    %p69 = scmp.eq.s32.totalorder %s15, 0
    %p70 = por %p68, %p69
    %s71 = ssub.s32 %s17, %s24
    %s72 = ssub.s32 %s16, %s28
    %s73 = sor.u32 %s71, %s72
    %p74 = scmp.eq.s32.totalorder %s73, 0
    %s76 = sadd.s32 %s75, 1
    %s77 = scalar_select %p74, %s75, %s76
    %p80 = pneg %p74
    %p81 = scmp.eq.s32.totalorder %s9, 1
    %p82 = por %p80, %p81
    %p83 = scmp.ne.s32.totalorder %s75, %s78
    %p84 = scmp.eq.s32.totalorder %s9, 0
    %p85 = por %p83, %p84
    %p86 = scmp.ne.s32.totalorder %s75, %s78
    %p87 = scmp.eq.s32.totalorder %s14, 1
    %p88 = por %p86, %p87
    %p89 = scmp.ne.s32.totalorder %s78, %s79
    %p90 = scmp.eq.s32.totalorder %s14, 0
    %p91 = por %p89, %p90
    %p92 = scmp.ne.s32.totalorder %s78, %s79
    %p93 = scmp.eq.s32.totalorder %s15, 1
    %p94 = por %p92, %p93
    %p96 = scmp.ne.s32.totalorder %s79, %s95
    %p97 = scmp.eq.s32.totalorder %s15, 0
    %p98 = por %p96, %p97
    %p99 = scmp.le.s32.totalorder 1, %s9
    %p100 = scmp.lt.s32.totalorder %s9, 3
    %p101 = pnand %p99, %p100
    %p102 = pneg %p101
    // Predicated region
    $region9: #{unit_tcn_forward.1} parent=5 // pred_check
      _
    $region10: #{unit_tcn_forward.1} parent=5 // pred_check_branch
      %104 = sbr.rel (%p101) target = $region12
    $region11: #{unit_tcn_forward.1} parent=5 // pred_region
      %s105 = ssub.s32 %s9, 1
      // Predicated region
      $region13: #{unit_tcn_forward.1} parent=11 // pred_check
        %p106 = pneg %p42
      $region14: #{unit_tcn_forward.1} parent=11 // pred_check_branch
        %108 = sbr.rel (%p106) target = $region16
      $region15: #{unit_tcn_forward.1} parent=11 // pred_region
        _
      $region16: #{unit_tcn_forward.1} parent=11 // pred_fallthru
        _
      // Predicated region
      $region17: #{unit_tcn_forward.1} parent=11 // pred_check
        %p109 = pneg %p63
      $region18: #{unit_tcn_forward.1} parent=11 // pred_check_branch
        %111 = sbr.rel (%p109) target = $region20
      $region19: #{unit_tcn_forward.1} parent=11 // pred_region
        _
      $region20: #{unit_tcn_forward.1} parent=11 // pred_fallthru
        _
    $region12: #{unit_tcn_forward.1} parent=5 // pred_fallthru
      _
    %p112 = scmp.lt.s32.totalorder %s9, 2
    // Predicated region
    $region21: #{unit_tcn_forward.1} parent=5 // pred_check
      %p113 = pneg %p112
    $region22: #{unit_tcn_forward.1} parent=5 // pred_check_branch
      %115 = sbr.rel (%p113) target = $region24
    $region23: #{unit_tcn_forward.1} parent=5 // pred_region
      _
    $region24: #{unit_tcn_forward.1} parent=5 // pred_fallthru
      _
    %p116 = scmp.le.s32.totalorder 1, %s9
    %p117 = scmp.lt.s32.totalorder %s9, 3
    %p118 = pnand %p116, %p117
    %p119 = pneg %p118
    // Predicated region
    $region25: #{unit_tcn_forward.1} parent=5 // pred_check
      _
    $region26: #{unit_tcn_forward.1} parent=5 // pred_check_branch
      %121 = sbr.rel (%p118) target = $region28
    $region27: #{unit_tcn_forward.1} parent=5 // pred_region
      %s122 = ssub.s32 %s9, 1
      %p123 = pneg %p42
      %p124 = pneg %p39
      %p125 = pneg %p63
      %p126 = pneg %p60
      %p127 = pneg %p91
      %p128 = pneg %p88
      %s129 = smul.u32 8, %s19
      %p130 = scmp.lt.s32.totalorder %s129, 15
      %s131 = scalar_select %p130, %s129, 15
      %p132 = scmp.lt.s32.totalorder %s18, 0
      %s133 = scalar_select %p132, %s18, 0
      %s134 = sadd.s32 %s133, %s131
      %s135 = smul.addr %s134, 8
      %s136 = scalar_lea.vmem %s3, %s135
      %s137 = smul.u32 8, %s19
      %p138 = scmp.lt.s32.totalorder %s137, 15
      %s139 = scalar_select %p138, %s137, 15
      %p140 = scmp.lt.s32.totalorder %s18, 0
      %s141 = scalar_select %p140, %s18, 0
      %s142 = sadd.s32 %s141, %s139
      %s143 = smul.addr %s142, 8
      %s144 = scalar_lea.vmem %s3, %s143
      %s145 = smul.u32 8, %s19
      %s147 = sand.u32 %s19, 1
      %p148 = scmp.eq.s32.totalorder %s19, 0
      // Predicated region
      $region29: #{unit_tcn_forward.1} parent=27 // pred_check
        %p149 = pneg %p148
      $region30: #{unit_tcn_forward.1} parent=27 // pred_check_branch
        %151 = sbr.rel (%p149) target = $region32
      $region31: #{unit_tcn_forward.1} parent=27 // pred_region
        %s152 = smul.u32 %s19, 128
        %s153 = smul.u32 %s18, 128
        %s154 = sshra.s32 %s153, 7
        %s155 = sand.u32 %s153, 127
        %s156 = sshra.s32 %s152, 3
        %s157 = sand.u32 %s152, 7
        %s158 = sadd.s32 %s154, %s156
        %s159 = smul.addr %s158, 4
        %s160 = scalar_lea.vmem %s0, %s159
        %s161 = smul.u32 %s147, 16
        %s162 = smul.addr %s161, 8
        %s163 = scalar_lea.vmem [#allocation2], %s162
        %s164 = scalar_lea.sflag [#allocation3], %s147
        %p166 = scmp.lt.u32.totalorder 128, 8
        %p167 = pneg %p166
        // Predicated region
        $region33: #{unit_tcn_forward.1} parent=31 // pred_check
          _
        $region34: #{unit_tcn_forward.1} parent=31 // pred_check_branch
          %169 = sbr.rel (%p166) target = $region36
        $region35: #{unit_tcn_forward.1} parent=31 // pred_region
          %s184 = sand.u32 128, 7
          %p185 = scmp.eq.s32.totalorder %s184, 0
          // Predicated region
          $region48: #{unit_tcn_forward.1} parent=35 // pred_check
            %p186 = pneg %p185
          $region49: #{unit_tcn_forward.1} parent=35 // pred_check_branch
            %188 = sbr.rel (%p186) target = $region51
          $region50: #{unit_tcn_forward.1} parent=35 // pred_region
            loop: start=0, step=1, limit=1
            $region52: #{unit_tcn_forward.1} parent=50 // loop_pre_header
              _
            $region53: #{unit_tcn_forward.1} parent=50 // loop_header
              %s190 = sphi 0, %s194
              %p191 = scmp.ge.s32.totalorder %s190, 1
              %s195 = sphi %s160, %s160
              %s196 = sphi %s163, %s163
            $region54: #{unit_tcn_forward.1} parent=50 // loop_header_branch
              %193 = sbr.rel (%p191) target = $region58
            $region55: #{unit_tcn_forward.1} parent=50 // loop_body
              %v197 = vld [vmem:[%s195] sm:$0xff]
              %198 = vst [vmem:[%s196] sm:$0xff] %v197
              %v199 = vld [vmem:[%s195 + $0x8] sm:$0xff]
              %200 = vst [vmem:[%s196 + $0x8] sm:$0xff] %v199
              %v201 = vld [vmem:[%s195 + $0x10] sm:$0xff]
              %202 = vst [vmem:[%s196 + $0x10] sm:$0xff] %v201
              %v203 = vld [vmem:[%s195 + $0x18] sm:$0xff]
              %204 = vst [vmem:[%s196 + $0x18] sm:$0xff] %v203
              %v205 = vld [vmem:[%s195 + $0x20] sm:$0xff]
              %206 = vst [vmem:[%s196 + $0x20] sm:$0xff] %v205
              %v207 = vld [vmem:[%s195 + $0x28] sm:$0xff]
              %208 = vst [vmem:[%s196 + $0x28] sm:$0xff] %v207
              %v209 = vld [vmem:[%s195 + $0x30] sm:$0xff]
              %210 = vst [vmem:[%s196 + $0x30] sm:$0xff] %v209
              %v211 = vld [vmem:[%s195 + $0x38] sm:$0xff]
              %212 = vst [vmem:[%s196 + $0x38] sm:$0xff] %v211
              %v213 = vld [vmem:[%s195 + $0x40] sm:$0xff]
              %214 = vst [vmem:[%s196 + $0x40] sm:$0xff] %v213
              %v215 = vld [vmem:[%s195 + $0x48] sm:$0xff]
              %216 = vst [vmem:[%s196 + $0x48] sm:$0xff] %v215
              %v217 = vld [vmem:[%s195 + $0x50] sm:$0xff]
              %218 = vst [vmem:[%s196 + $0x50] sm:$0xff] %v217
              %v219 = vld [vmem:[%s195 + $0x58] sm:$0xff]
              %220 = vst [vmem:[%s196 + $0x58] sm:$0xff] %v219
              %v221 = vld [vmem:[%s195 + $0x60] sm:$0xff]
              %222 = vst [vmem:[%s196 + $0x60] sm:$0xff] %v221
              %v223 = vld [vmem:[%s195 + $0x68] sm:$0xff]
              %224 = vst [vmem:[%s196 + $0x68] sm:$0xff] %v223
              %v225 = vld [vmem:[%s195 + $0x70] sm:$0xff]
              %226 = vst [vmem:[%s196 + $0x70] sm:$0xff] %v225
              %v227 = vld [vmem:[%s195 + $0x78] sm:$0xff]
              %228 = vst [vmem:[%s196 + $0x78] sm:$0xff] %v227
            $region56: #{unit_tcn_forward.1} parent=50 // loop_footer
              %s194 = sadd.s32 1, %s190
            $region57: #{unit_tcn_forward.1} parent=50 // loop_footer_branch
              %189 = sbr.rel target = $region53
            $region58: #{unit_tcn_forward.1} parent=50 // loop_exit
              _
          $region51: #{unit_tcn_forward.1} parent=35 // pred_fallthru
            _
          %p229 = pneg %p185
          // Predicated region
          $region59: #{unit_tcn_forward.1} parent=35 // pred_check
            _
          $region60: #{unit_tcn_forward.1} parent=35 // pred_check_branch
            %231 = sbr.rel (%p185) target = $region62
          $region61: #{unit_tcn_forward.1} parent=35 // pred_region
            %s232 = sand.u32 128, 7
          $region62: #{unit_tcn_forward.1} parent=35 // pred_fallthru
            _
        $region36: #{unit_tcn_forward.1} parent=31 // pred_fallthru
          _
        // Predicated region
        $region37: #{unit_tcn_forward.1} parent=31 // pred_check
          %p170 = pneg %p166
        $region38: #{unit_tcn_forward.1} parent=31 // pred_check_branch
          %172 = sbr.rel (%p170) target = $region40
        $region39: #{unit_tcn_forward.1} parent=31 // pred_region
          %s173 = sshllo.u32 0, 128
          loop: start=0, step=1, limit=1
          $region41: #{unit_tcn_forward.1} parent=39 // loop_pre_header
            _
          $region42: #{unit_tcn_forward.1} parent=39 // loop_header
            %s175 = sphi 0, %s179
            %p176 = scmp.ge.s32.totalorder %s175, 1
            %s180 = sphi %s160, %s160
            %s181 = sphi %s163, %s163
          $region43: #{unit_tcn_forward.1} parent=39 // loop_header_branch
            %178 = sbr.rel (%p176) target = $region47
          $region44: #{unit_tcn_forward.1} parent=39 // loop_body
            %v182 = vld [vmem:[%s180] sm:%s173]
            %183 = vst [vmem:[%s181] sm:%s173] %v182
          $region45: #{unit_tcn_forward.1} parent=39 // loop_footer
            %s179 = sadd.s32 1, %s175
          $region46: #{unit_tcn_forward.1} parent=39 // loop_footer_branch
            %174 = sbr.rel target = $region42
          $region47: #{unit_tcn_forward.1} parent=39 // loop_exit
            _
        $region40: #{unit_tcn_forward.1} parent=31 // pred_fallthru
          _
        // Predicated region
        $region63: #{unit_tcn_forward.1} parent=31 // pred_check
          _
        $region64: #{unit_tcn_forward.1} parent=31 // pred_check_branch
          %235 = sbr.rel (0) target = $region66
        $region65: #{unit_tcn_forward.1} parent=31 // pred_region
          %236 = vsyncadd %s164, 2048
        $region66: #{unit_tcn_forward.1} parent=31 // pred_fallthru
          _
      $region32: #{unit_tcn_forward.1} parent=27 // pred_fallthru
        _
      %s237 = sadd.s32 %s19, 1
      %p238 = scmp.lt.s32.totalorder %s237, 2
      // Predicated region
      $region67: #{unit_tcn_forward.1} parent=27 // pred_check
        %p239 = pneg %p238
      $region68: #{unit_tcn_forward.1} parent=27 // pred_check_branch
        %241 = sbr.rel (%p239) target = $region70
      $region69: #{unit_tcn_forward.1} parent=27 // pred_region
        %s242 = ssub.s32 1, %s147
        %s243 = smul.u32 %s237, 128
        %s244 = smul.u32 %s18, 128
        %s245 = sshra.s32 %s244, 7
        %s246 = sand.u32 %s244, 127
        %s247 = sshra.s32 %s243, 3
        %s248 = sand.u32 %s243, 7
        %s249 = sadd.s32 %s245, %s247
        %s250 = smul.addr %s249, 4
        %s251 = scalar_lea.vmem %s0, %s250
        %s252 = smul.u32 %s242, 16
        %s253 = smul.addr %s252, 8
        %s254 = scalar_lea.vmem [#allocation2], %s253
        %s255 = scalar_lea.sflag [#allocation3], %s242
        %p257 = scmp.lt.u32.totalorder 128, 8
        %p258 = pneg %p257
        // Predicated region
        $region71: #{unit_tcn_forward.1} parent=69 // pred_check
          _
        $region72: #{unit_tcn_forward.1} parent=69 // pred_check_branch
          %260 = sbr.rel (%p257) target = $region74
        $region73: #{unit_tcn_forward.1} parent=69 // pred_region
          %s275 = sand.u32 128, 7
          %p276 = scmp.eq.s32.totalorder %s275, 0
          // Predicated region
          $region86: #{unit_tcn_forward.1} parent=73 // pred_check
            %p277 = pneg %p276
          $region87: #{unit_tcn_forward.1} parent=73 // pred_check_branch
            %279 = sbr.rel (%p277) target = $region89
          $region88: #{unit_tcn_forward.1} parent=73 // pred_region
            loop: start=0, step=1, limit=1
            $region90: #{unit_tcn_forward.1} parent=88 // loop_pre_header
              _
            $region91: #{unit_tcn_forward.1} parent=88 // loop_header
              %s281 = sphi 0, %s285
              %p282 = scmp.ge.s32.totalorder %s281, 1
              %s286 = sphi %s251, %s251
              %s287 = sphi %s254, %s254
            $region92: #{unit_tcn_forward.1} parent=88 // loop_header_branch
              %284 = sbr.rel (%p282) target = $region96
            $region93: #{unit_tcn_forward.1} parent=88 // loop_body
              %v288 = vld [vmem:[%s286] sm:$0xff]
              %289 = vst [vmem:[%s287] sm:$0xff] %v288
              %v290 = vld [vmem:[%s286 + $0x8] sm:$0xff]
              %291 = vst [vmem:[%s287 + $0x8] sm:$0xff] %v290
              %v292 = vld [vmem:[%s286 + $0x10] sm:$0xff]
              %293 = vst [vmem:[%s287 + $0x10] sm:$0xff] %v292
              %v294 = vld [vmem:[%s286 + $0x18] sm:$0xff]
              %295 = vst [vmem:[%s287 + $0x18] sm:$0xff] %v294
              %v296 = vld [vmem:[%s286 + $0x20] sm:$0xff]
              %297 = vst [vmem:[%s287 + $0x20] sm:$0xff] %v296
              %v298 = vld [vmem:[%s286 + $0x28] sm:$0xff]
              %299 = vst [vmem:[%s287 + $0x28] sm:$0xff] %v298
              %v300 = vld [vmem:[%s286 + $0x30] sm:$0xff]
              %301 = vst [vmem:[%s287 + $0x30] sm:$0xff] %v300
              %v302 = vld [vmem:[%s286 + $0x38] sm:$0xff]
              %303 = vst [vmem:[%s287 + $0x38] sm:$0xff] %v302
              %v304 = vld [vmem:[%s286 + $0x40] sm:$0xff]
              %305 = vst [vmem:[%s287 + $0x40] sm:$0xff] %v304
              %v306 = vld [vmem:[%s286 + $0x48] sm:$0xff]
              %307 = vst [vmem:[%s287 + $0x48] sm:$0xff] %v306
              %v308 = vld [vmem:[%s286 + $0x50] sm:$0xff]
              %309 = vst [vmem:[%s287 + $0x50] sm:$0xff] %v308
              %v310 = vld [vmem:[%s286 + $0x58] sm:$0xff]
              %311 = vst [vmem:[%s287 + $0x58] sm:$0xff] %v310
              %v312 = vld [vmem:[%s286 + $0x60] sm:$0xff]
              %313 = vst [vmem:[%s287 + $0x60] sm:$0xff] %v312
              %v314 = vld [vmem:[%s286 + $0x68] sm:$0xff]
              %315 = vst [vmem:[%s287 + $0x68] sm:$0xff] %v314
              %v316 = vld [vmem:[%s286 + $0x70] sm:$0xff]
              %317 = vst [vmem:[%s287 + $0x70] sm:$0xff] %v316
              %v318 = vld [vmem:[%s286 + $0x78] sm:$0xff]
              %319 = vst [vmem:[%s287 + $0x78] sm:$0xff] %v318
            $region94: #{unit_tcn_forward.1} parent=88 // loop_footer
              %s285 = sadd.s32 1, %s281
            $region95: #{unit_tcn_forward.1} parent=88 // loop_footer_branch
              %280 = sbr.rel target = $region91
            $region96: #{unit_tcn_forward.1} parent=88 // loop_exit
              _
          $region89: #{unit_tcn_forward.1} parent=73 // pred_fallthru
            _
          %p320 = pneg %p276
          // Predicated region
          $region97: #{unit_tcn_forward.1} parent=73 // pred_check
            _
          $region98: #{unit_tcn_forward.1} parent=73 // pred_check_branch
            %322 = sbr.rel (%p276) target = $region100
          $region99: #{unit_tcn_forward.1} parent=73 // pred_region
            %s323 = sand.u32 128, 7
          $region100: #{unit_tcn_forward.1} parent=73 // pred_fallthru
            _
        $region74: #{unit_tcn_forward.1} parent=69 // pred_fallthru
          _
        // Predicated region
        $region75: #{unit_tcn_forward.1} parent=69 // pred_check
          %p261 = pneg %p257
        $region76: #{unit_tcn_forward.1} parent=69 // pred_check_branch
          %263 = sbr.rel (%p261) target = $region78
        $region77: #{unit_tcn_forward.1} parent=69 // pred_region
          %s264 = sshllo.u32 0, 128
          loop: start=0, step=1, limit=1
          $region79: #{unit_tcn_forward.1} parent=77 // loop_pre_header
            _
          $region80: #{unit_tcn_forward.1} parent=77 // loop_header
            %s266 = sphi 0, %s270
            %p267 = scmp.ge.s32.totalorder %s266, 1
            %s271 = sphi %s251, %s251
            %s272 = sphi %s254, %s254
          $region81: #{unit_tcn_forward.1} parent=77 // loop_header_branch
            %269 = sbr.rel (%p267) target = $region85
          $region82: #{unit_tcn_forward.1} parent=77 // loop_body
            %v273 = vld [vmem:[%s271] sm:%s264]
            %274 = vst [vmem:[%s272] sm:%s264] %v273
          $region83: #{unit_tcn_forward.1} parent=77 // loop_footer
            %s270 = sadd.s32 1, %s266
          $region84: #{unit_tcn_forward.1} parent=77 // loop_footer_branch
            %265 = sbr.rel target = $region80
          $region85: #{unit_tcn_forward.1} parent=77 // loop_exit
            _
        $region78: #{unit_tcn_forward.1} parent=69 // pred_fallthru
          _
        // Predicated region
        $region101: #{unit_tcn_forward.1} parent=69 // pred_check
          _
        $region102: #{unit_tcn_forward.1} parent=69 // pred_check_branch
          %326 = sbr.rel (0) target = $region104
        $region103: #{unit_tcn_forward.1} parent=69 // pred_region
          %327 = vsyncadd %s255, 2048
        $region104: #{unit_tcn_forward.1} parent=69 // pred_fallthru
          _
      $region70: #{unit_tcn_forward.1} parent=27 // pred_fallthru
        _
      %s328 = smul.u32 %s19, 128
      %s329 = smul.u32 %s18, 128
      %s330 = smul.u32 %s147, 16
      %s331 = smul.addr %s330, 8
      %s332 = scalar_lea.vmem [#allocation2], %s331
      %s333 = scalar_lea.sflag [#allocation3], %s147
      %s334 = smul.u32 4, 32
      %s335 = smul.u32 %s334, 1
      %s336 = sshll.u32 %s335, 4
      %337 = dma.done %s333, %s336
      %v338 = vld [vmem:[%s1] sm:$0xff]
      %v339 = vld [vmem:[%s2] sm:$0xff]
      %341 = vset.pattern.permute.xlu0 0
      %342 = vperm.xlu0 %341, %v339
      %v343 = vpop.permute.xlu0 %342
      %v345 = vld [vmem:[%s332] sm:$0xff]
      %v346 = vld [vmem:[%s332 + $0x8] sm:$0xff]
      %v347 = vld [vmem:[%s332 + $0x10] sm:$0xff]
      %v348 = vld [vmem:[%s332 + $0x18] sm:$0xff]
      %v349 = vld [vmem:[%s332 + $0x20] sm:$0xff]
      %v350 = vld [vmem:[%s332 + $0x28] sm:$0xff]
      %v351 = vld [vmem:[%s332 + $0x30] sm:$0xff]
      %v352 = vld [vmem:[%s332 + $0x38] sm:$0xff]
      %v353 = vld [vmem:[%s332 + $0x40] sm:$0xff]
      %v355 = vunpack.c.l.b16 %v338
      %v356 = vunpack.c.h.b16 %v338
      %v357 = vpack.c.b16 %v355, %v355
      %v358 = vpack.c.b16 %v356, %v356
      %vm360 = vcmask 130048
      %v362 = vsel %vm360, %v358, 0
      %364 = vmatprep.subr.bf16.mxu0 0
      %365 = vmatpush1.bf16.msra.mxu0 %v345
      %366 = vmatprep.subr.bf16.mxu0 0
      %367 = vmatpush1.bf16.msra.mxu0 %v346
      %368 = vmatprep.subr.bf16.mxu0 0
      %369 = vmatpush1.bf16.msra.mxu0 %v347
      %370 = vmatprep.subr.bf16.mxu0 0
      %371 = vmatpush1.bf16.msra.mxu0 %v348
      %372 = vmatprep.subr.bf16.mxu0 0
      %373 = vmatpush1.bf16.msra.mxu0 %v349
      %374 = vmatprep.subr.bf16.mxu0 0
      %375 = vmatpush1.bf16.msra.mxu0 %v350
      %376 = vmatprep.subr.bf16.mxu0 0
      %377 = vmatpush1.bf16.msra.mxu0 %v351
      %378 = vmatprep.subr.bf16.mxu0 0
      %379 = vmatpush1.bf16.msra.mxu0 %v352
      %380 = vmatprep.subr.bf16.mxu0 0
      %381 = vmatpush1.bf16.msra.mxu0 %v353
      %382 = vmatprep.subr.bf16.mxu0 0
      %383 = vmatpush1.bf16.msra.mxu0 0
      %384 = vmatprep.subr.bf16.mxu0 0
      %385 = vmatpush1.bf16.msra.mxu0 0
      %386 = vmatprep.subr.bf16.mxu0 0
      %387 = vmatpush1.bf16.msra.mxu0 0
      %388 = vmatprep.subr.bf16.mxu0 0
      %389 = vmatpush1.bf16.msra.mxu0 0
      %390 = vmatprep.subr.bf16.mxu0 0
      %391 = vmatpush1.bf16.msra.mxu0 0
      %392 = vmatprep.subr.bf16.mxu0 0
      %393 = vmatpush1.bf16.msra.mxu0 0
      %394 = vmatprep.subr.bf16.mxu0 0
      %395 = vmatpush1.bf16.msra.mxu0 0
      %396 = vmatprep.mubr.bf16.mxu0 %v362
      %397 = vmatmul.mubr.bf16.gmra.mrb[0].mxu0 %v357
      %v398 = vpop.f32.mrb[0].mxu0
      %v399 = vadd.f32 %v343, %v398
      %v400 = vpop.f32.mrb[0].mxu0
      %v401 = vpop.f32.mrb[0].mxu0
      %v402 = vpop.f32.mrb[0].mxu0
      %403 = vdwg.mxu0
      %404 = vst [vmem:[%s144] sm:$0xff] %v399
      %s405 = scalar_lea.vmem %s332, 8 [#allocation2]
      %v406 = vld [vmem:[%s405] sm:$0xff]
      %v407 = vld [vmem:[%s405 + $0x8] sm:$0xff]
      %v408 = vld [vmem:[%s405 + $0x10] sm:$0xff]
      %v409 = vld [vmem:[%s405 + $0x18] sm:$0xff]
      %v410 = vld [vmem:[%s405 + $0x20] sm:$0xff]
      %v411 = vld [vmem:[%s405 + $0x28] sm:$0xff]
      %v412 = vld [vmem:[%s405 + $0x30] sm:$0xff]
      %v413 = vld [vmem:[%s405 + $0x38] sm:$0xff]
      %v414 = vld [vmem:[%s405 + $0x40] sm:$0xff]
      %415 = vmatprep.subr.bf16.mxu0 0
      %416 = vmatpush1.bf16.msra.mxu0 %v406
      %417 = vmatprep.subr.bf16.mxu0 0
      %418 = vmatpush1.bf16.msra.mxu0 %v407
      %419 = vmatprep.subr.bf16.mxu0 0
      %420 = vmatpush1.bf16.msra.mxu0 %v408
      %421 = vmatprep.subr.bf16.mxu0 0
      %422 = vmatpush1.bf16.msra.mxu0 %v409
      %423 = vmatprep.subr.bf16.mxu0 0
      %424 = vmatpush1.bf16.msra.mxu0 %v410
      %425 = vmatprep.subr.bf16.mxu0 0
      %426 = vmatpush1.bf16.msra.mxu0 %v411
      %427 = vmatprep.subr.bf16.mxu0 0
      %428 = vmatpush1.bf16.msra.mxu0 %v412
      %429 = vmatprep.subr.bf16.mxu0 0
      %430 = vmatpush1.bf16.msra.mxu0 %v413
      %431 = vmatprep.subr.bf16.mxu0 0
      %432 = vmatpush1.bf16.msra.mxu0 %v414
      %433 = vmatprep.subr.bf16.mxu0 0
      %434 = vmatpush1.bf16.msra.mxu0 0
      %435 = vmatprep.subr.bf16.mxu0 0
      %436 = vmatpush1.bf16.msra.mxu0 0
      %437 = vmatprep.subr.bf16.mxu0 0
      %438 = vmatpush1.bf16.msra.mxu0 0
      %439 = vmatprep.subr.bf16.mxu0 0
      %440 = vmatpush1.bf16.msra.mxu0 0
      %441 = vmatprep.subr.bf16.mxu0 0
      %442 = vmatpush1.bf16.msra.mxu0 0
      %443 = vmatprep.subr.bf16.mxu0 0
      %444 = vmatpush1.bf16.msra.mxu0 0
      %445 = vmatprep.subr.bf16.mxu0 0
      %446 = vmatpush1.bf16.msra.mxu0 0
      %447 = vmatprep.mubr.bf16.mxu0 %v362
      %448 = vmatmul.mubr.bf16.gmra.mrb[0].mxu0 %v357
      %v449 = vpop.f32.mrb[0].mxu0
      %v450 = vadd.f32 %v343, %v449
      %v451 = vpop.f32.mrb[0].mxu0
      %v452 = vpop.f32.mrb[0].mxu0
      %v453 = vpop.f32.mrb[0].mxu0
      %454 = vdwg.mxu0
      %s455 = scalar_lea.vmem %s144, 8
      %456 = vst [vmem:[%s455] sm:$0xff] %v450
      %s457 = scalar_lea.vmem %s332, 16 [#allocation2]
      %v458 = vld [vmem:[%s457] sm:$0xff]
      %v459 = vld [vmem:[%s457 + $0x8] sm:$0xff]
      %v460 = vld [vmem:[%s457 + $0x10] sm:$0xff]
      %v461 = vld [vmem:[%s457 + $0x18] sm:$0xff]
      %v462 = vld [vmem:[%s457 + $0x20] sm:$0xff]
      %v463 = vld [vmem:[%s457 + $0x28] sm:$0xff]
      %v464 = vld [vmem:[%s457 + $0x30] sm:$0xff]
      %v465 = vld [vmem:[%s457 + $0x38] sm:$0xff]
      %v466 = vld [vmem:[%s457 + $0x40] sm:$0xff]
      %467 = vmatprep.subr.bf16.mxu0 0
      %468 = vmatpush1.bf16.msra.mxu0 %v458
      %469 = vmatprep.subr.bf16.mxu0 0
      %470 = vmatpush1.bf16.msra.mxu0 %v459
      %471 = vmatprep.subr.bf16.mxu0 0
      %472 = vmatpush1.bf16.msra.mxu0 %v460
      %473 = vmatprep.subr.bf16.mxu0 0
      %474 = vmatpush1.bf16.msra.mxu0 %v461
      %475 = vmatprep.subr.bf16.mxu0 0
      %476 = vmatpush1.bf16.msra.mxu0 %v462
      %477 = vmatprep.subr.bf16.mxu0 0
      %478 = vmatpush1.bf16.msra.mxu0 %v463
      %479 = vmatprep.subr.bf16.mxu0 0
      %480 = vmatpush1.bf16.msra.mxu0 %v464
      %481 = vmatprep.subr.bf16.mxu0 0
      %482 = vmatpush1.bf16.msra.mxu0 %v465
      %483 = vmatprep.subr.bf16.mxu0 0
      %484 = vmatpush1.bf16.msra.mxu0 %v466
      %485 = vmatprep.subr.bf16.mxu0 0
      %486 = vmatpush1.bf16.msra.mxu0 0
      %487 = vmatprep.subr.bf16.mxu0 0
      %488 = vmatpush1.bf16.msra.mxu0 0
      %489 = vmatprep.subr.bf16.mxu0 0
      %490 = vmatpush1.bf16.msra.mxu0 0
      %491 = vmatprep.subr.bf16.mxu0 0
      %492 = vmatpush1.bf16.msra.mxu0 0
      %493 = vmatprep.subr.bf16.mxu0 0
      %494 = vmatpush1.bf16.msra.mxu0 0
      %495 = vmatprep.subr.bf16.mxu0 0
      %496 = vmatpush1.bf16.msra.mxu0 0
      %497 = vmatprep.subr.bf16.mxu0 0
      %498 = vmatpush1.bf16.msra.mxu0 0
      %499 = vmatprep.mubr.bf16.mxu0 %v362
      %500 = vmatmul.mubr.bf16.gmra.mrb[0].mxu0 %v357
      %v501 = vpop.f32.mrb[0].mxu0
      %v502 = vadd.f32 %v343, %v501
      %v503 = vpop.f32.mrb[0].mxu0
      %v504 = vpop.f32.mrb[0].mxu0
      %v505 = vpop.f32.mrb[0].mxu0
      %506 = vdwg.mxu0
      %s507 = scalar_lea.vmem %s144, 16
      %508 = vst [vmem:[%s507] sm:$0xff] %v502
      %s509 = scalar_lea.vmem %s332, 24 [#allocation2]
      %v510 = vld [vmem:[%s509] sm:$0xff]
      %v511 = vld [vmem:[%s509 + $0x8] sm:$0xff]
      %v512 = vld [vmem:[%s509 + $0x10] sm:$0xff]
      %v513 = vld [vmem:[%s509 + $0x18] sm:$0xff]
      %v514 = vld [vmem:[%s509 + $0x20] sm:$0xff]
      %v515 = vld [vmem:[%s509 + $0x28] sm:$0xff]
      %v516 = vld [vmem:[%s509 + $0x30] sm:$0xff]
      %v517 = vld [vmem:[%s509 + $0x38] sm:$0xff]
      %v518 = vld [vmem:[%s509 + $0x40] sm:$0xff]
      %519 = vmatprep.subr.bf16.mxu0 0
      %520 = vmatpush1.bf16.msra.mxu0 %v510
      %521 = vmatprep.subr.bf16.mxu0 0
      %522 = vmatpush1.bf16.msra.mxu0 %v511
      %523 = vmatprep.subr.bf16.mxu0 0
      %524 = vmatpush1.bf16.msra.mxu0 %v512
      %525 = vmatprep.subr.bf16.mxu0 0
      %526 = vmatpush1.bf16.msra.mxu0 %v513
      %527 = vmatprep.subr.bf16.mxu0 0
      %528 = vmatpush1.bf16.msra.mxu0 %v514
      %529 = vmatprep.subr.bf16.mxu0 0
      %530 = vmatpush1.bf16.msra.mxu0 %v515
      %531 = vmatprep.subr.bf16.mxu0 0
      %532 = vmatpush1.bf16.msra.mxu0 %v516
      %533 = vmatprep.subr.bf16.mxu0 0
      %534 = vmatpush1.bf16.msra.mxu0 %v517
      %535 = vmatprep.subr.bf16.mxu0 0
      %536 = vmatpush1.bf16.msra.mxu0 %v518
      %537 = vmatprep.subr.bf16.mxu0 0
      %538 = vmatpush1.bf16.msra.mxu0 0
      %539 = vmatprep.subr.bf16.mxu0 0
      %540 = vmatpush1.bf16.msra.mxu0 0
      %541 = vmatprep.subr.bf16.mxu0 0
      %542 = vmatpush1.bf16.msra.mxu0 0
      %543 = vmatprep.subr.bf16.mxu0 0
      %544 = vmatpush1.bf16.msra.mxu0 0
      %545 = vmatprep.subr.bf16.mxu0 0
      %546 = vmatpush1.bf16.msra.mxu0 0
      %547 = vmatprep.subr.bf16.mxu0 0
      %548 = vmatpush1.bf16.msra.mxu0 0
      %549 = vmatprep.subr.bf16.mxu0 0
      %550 = vmatpush1.bf16.msra.mxu0 0
      %551 = vmatprep.mubr.bf16.mxu0 %v362
      %552 = vmatmul.mubr.bf16.gmra.mrb[0].mxu0 %v357
      %v553 = vpop.f32.mrb[0].mxu0
      %v554 = vadd.f32 %v343, %v553
      %v555 = vpop.f32.mrb[0].mxu0
      %v556 = vpop.f32.mrb[0].mxu0
      %v557 = vpop.f32.mrb[0].mxu0
      %558 = vdwg.mxu0
      %s559 = scalar_lea.vmem %s144, 24
      %560 = vst [vmem:[%s559] sm:$0xff] %v554
      %s561 = scalar_lea.vmem %s332, 32 [#allocation2]
      %v562 = vld [vmem:[%s561] sm:$0xff]
      %v563 = vld [vmem:[%s561 + $0x8] sm:$0xff]
      %v564 = vld [vmem:[%s561 + $0x10] sm:$0xff]
      %v565 = vld [vmem:[%s561 + $0x18] sm:$0xff]
      %v566 = vld [vmem:[%s561 + $0x20] sm:$0xff]
      %v567 = vld [vmem:[%s561 + $0x28] sm:$0xff]
      %v568 = vld [vmem:[%s561 + $0x30] sm:$0xff]
      %v569 = vld [vmem:[%s561 + $0x38] sm:$0xff]
      %v570 = vld [vmem:[%s561 + $0x40] sm:$0xff]
      %571 = vmatprep.subr.bf16.mxu0 0
      %572 = vmatpush1.bf16.msra.mxu0 %v562
      %573 = vmatprep.subr.bf16.mxu0 0
      %574 = vmatpush1.bf16.msra.mxu0 %v563
      %575 = vmatprep.subr.bf16.mxu0 0
      %576 = vmatpush1.bf16.msra.mxu0 %v564
      %577 = vmatprep.subr.bf16.mxu0 0
      %578 = vmatpush1.bf16.msra.mxu0 %v565
      %579 = vmatprep.subr.bf16.mxu0 0
      %580 = vmatpush1.bf16.msra.mxu0 %v566
      %581 = vmatprep.subr.bf16.mxu0 0
      %582 = vmatpush1.bf16.msra.mxu0 %v567
      %583 = vmatprep.subr.bf16.mxu0 0
      %584 = vmatpush1.bf16.msra.mxu0 %v568
      %585 = vmatprep.subr.bf16.mxu0 0
      %586 = vmatpush1.bf16.msra.mxu0 %v569
      %587 = vmatprep.subr.bf16.mxu0 0
      %588 = vmatpush1.bf16.msra.mxu0 %v570
      %589 = vmatprep.subr.bf16.mxu0 0
      %590 = vmatpush1.bf16.msra.mxu0 0
      %591 = vmatprep.subr.bf16.mxu0 0
      %592 = vmatpush1.bf16.msra.mxu0 0
      %593 = vmatprep.subr.bf16.mxu0 0
      %594 = vmatpush1.bf16.msra.mxu0 0
      %595 = vmatprep.subr.bf16.mxu0 0
      %596 = vmatpush1.bf16.msra.mxu0 0
      %597 = vmatprep.subr.bf16.mxu0 0
      %598 = vmatpush1.bf16.msra.mxu0 0
      %599 = vmatprep.subr.bf16.mxu0 0
      %600 = vmatpush1.bf16.msra.mxu0 0
      %601 = vmatprep.subr.bf16.mxu0 0
      %602 = vmatpush1.bf16.msra.mxu0 0
      %603 = vmatprep.mubr.bf16.mxu0 %v362
      %604 = vmatmul.mubr.bf16.gmra.mrb[0].mxu0 %v357
      %v605 = vpop.f32.mrb[0].mxu0
      %v606 = vadd.f32 %v343, %v605
      %v607 = vpop.f32.mrb[0].mxu0
      %v608 = vpop.f32.mrb[0].mxu0
      %v609 = vpop.f32.mrb[0].mxu0
      %610 = vdwg.mxu0
      %s611 = scalar_lea.vmem %s144, 32
      %612 = vst [vmem:[%s611] sm:$0xff] %v606
      %s613 = scalar_lea.vmem %s332, 40 [#allocation2]
      %v614 = vld [vmem:[%s613] sm:$0xff]
      %v615 = vld [vmem:[%s613 + $0x8] sm:$0xff]
      %v616 = vld [vmem:[%s613 + $0x10] sm:$0xff]
      %v617 = vld [vmem:[%s613 + $0x18] sm:$0xff]
      %v618 = vld [vmem:[%s613 + $0x20] sm:$0xff]
      %v619 = vld [vmem:[%s613 + $0x28] sm:$0xff]
      %v620 = vld [vmem:[%s613 + $0x30] sm:$0xff]
      %v621 = vld [vmem:[%s613 + $0x38] sm:$0xff]
      %v622 = vld [vmem:[%s613 + $0x40] sm:$0xff]
      %623 = vmatprep.subr.bf16.mxu0 0
      %624 = vmatpush1.bf16.msra.mxu0 %v614
      %625 = vmatprep.subr.bf16.mxu0 0
      %626 = vmatpush1.bf16.msra.mxu0 %v615
      %627 = vmatprep.subr.bf16.mxu0 0
      %628 = vmatpush1.bf16.msra.mxu0 %v616
      %629 = vmatprep.subr.bf16.mxu0 0
      %630 = vmatpush1.bf16.msra.mxu0 %v617
      %631 = vmatprep.subr.bf16.mxu0 0
      %632 = vmatpush1.bf16.msra.mxu0 %v618
      %633 = vmatprep.subr.bf16.mxu0 0
      %634 = vmatpush1.bf16.msra.mxu0 %v619
      %635 = vmatprep.subr.bf16.mxu0 0
      %636 = vmatpush1.bf16.msra.mxu0 %v620
      %637 = vmatprep.subr.bf16.mxu0 0
      %638 = vmatpush1.bf16.msra.mxu0 %v621
      %639 = vmatprep.subr.bf16.mxu0 0
      %640 = vmatpush1.bf16.msra.mxu0 %v622
      %641 = vmatprep.subr.bf16.mxu0 0
      %642 = vmatpush1.bf16.msra.mxu0 0
      %643 = vmatprep.subr.bf16.mxu0 0
      %644 = vmatpush1.bf16.msra.mxu0 0
      %645 = vmatprep.subr.bf16.mxu0 0
      %646 = vmatpush1.bf16.msra.mxu0 0
      %647 = vmatprep.subr.bf16.mxu0 0
      %648 = vmatpush1.bf16.msra.mxu0 0
      %649 = vmatprep.subr.bf16.mxu0 0
      %650 = vmatpush1.bf16.msra.mxu0 0
      %651 = vmatprep.subr.bf16.mxu0 0
      %652 = vmatpush1.bf16.msra.mxu0 0
      %653 = vmatprep.subr.bf16.mxu0 0
      %654 = vmatpush1.bf16.msra.mxu0 0
      %655 = vmatprep.mubr.bf16.mxu0 %v362
      %656 = vmatmul.mubr.bf16.gmra.mrb[0].mxu0 %v357
      %v657 = vpop.f32.mrb[0].mxu0
      %v658 = vadd.f32 %v343, %v657
      %v659 = vpop.f32.mrb[0].mxu0
      %v660 = vpop.f32.mrb[0].mxu0
      %v661 = vpop.f32.mrb[0].mxu0
      %662 = vdwg.mxu0
      %s663 = scalar_lea.vmem %s144, 40
      %664 = vst [vmem:[%s663] sm:$0xff] %v658
      %s665 = scalar_lea.vmem %s332, 48 [#allocation2]
      %v666 = vld [vmem:[%s665] sm:$0xff]
      %v667 = vld [vmem:[%s665 + $0x8] sm:$0xff]
      %v668 = vld [vmem:[%s665 + $0x10] sm:$0xff]
      %v669 = vld [vmem:[%s665 + $0x18] sm:$0xff]
      %v670 = vld [vmem:[%s665 + $0x20] sm:$0xff]
      %v671 = vld [vmem:[%s665 + $0x28] sm:$0xff]
      %v672 = vld [vmem:[%s665 + $0x30] sm:$0xff]
      %v673 = vld [vmem:[%s665 + $0x38] sm:$0xff]
      %v674 = vld [vmem:[%s665 + $0x40] sm:$0xff]
      %675 = vmatprep.subr.bf16.mxu0 0
      %676 = vmatpush1.bf16.msra.mxu0 %v666
      %677 = vmatprep.subr.bf16.mxu0 0
      %678 = vmatpush1.bf16.msra.mxu0 %v667
      %679 = vmatprep.subr.bf16.mxu0 0
      %680 = vmatpush1.bf16.msra.mxu0 %v668
      %681 = vmatprep.subr.bf16.mxu0 0
      %682 = vmatpush1.bf16.msra.mxu0 %v669
      %683 = vmatprep.subr.bf16.mxu0 0
      %684 = vmatpush1.bf16.msra.mxu0 %v670
      %685 = vmatprep.subr.bf16.mxu0 0
      %686 = vmatpush1.bf16.msra.mxu0 %v671
      %687 = vmatprep.subr.bf16.mxu0 0
      %688 = vmatpush1.bf16.msra.mxu0 %v672
      %689 = vmatprep.subr.bf16.mxu0 0
      %690 = vmatpush1.bf16.msra.mxu0 %v673
      %691 = vmatprep.subr.bf16.mxu0 0
      %692 = vmatpush1.bf16.msra.mxu0 %v674
      %693 = vmatprep.subr.bf16.mxu0 0
      %694 = vmatpush1.bf16.msra.mxu0 0
      %695 = vmatprep.subr.bf16.mxu0 0
      %696 = vmatpush1.bf16.msra.mxu0 0
      %697 = vmatprep.subr.bf16.mxu0 0
      %698 = vmatpush1.bf16.msra.mxu0 0
      %699 = vmatprep.subr.bf16.mxu0 0
      %700 = vmatpush1.bf16.msra.mxu0 0
      %701 = vmatprep.subr.bf16.mxu0 0
      %702 = vmatpush1.bf16.msra.mxu0 0
      %703 = vmatprep.subr.bf16.mxu0 0
      %704 = vmatpush1.bf16.msra.mxu0 0
      %705 = vmatprep.subr.bf16.mxu0 0
      %706 = vmatpush1.bf16.msra.mxu0 0
      %707 = vmatprep.mubr.bf16.mxu0 %v362
      %708 = vmatmul.mubr.bf16.gmra.mrb[0].mxu0 %v357
      %v709 = vpop.f32.mrb[0].mxu0
      %v710 = vadd.f32 %v343, %v709
      %v711 = vpop.f32.mrb[0].mxu0
      %v712 = vpop.f32.mrb[0].mxu0
      %v713 = vpop.f32.mrb[0].mxu0
      %714 = vdwg.mxu0
      %s715 = scalar_lea.vmem %s144, 48
      %716 = vst [vmem:[%s715] sm:$0xff] %v710
      %s717 = scalar_lea.vmem %s332, 56 [#allocation2]
      %v718 = vld [vmem:[%s717] sm:$0xff]
      %v719 = vld [vmem:[%s717 + $0x8] sm:$0xff]
      %v720 = vld [vmem:[%s717 + $0x10] sm:$0xff]
      %v721 = vld [vmem:[%s717 + $0x18] sm:$0xff]
      %v722 = vld [vmem:[%s717 + $0x20] sm:$0xff]
      %v723 = vld [vmem:[%s717 + $0x28] sm:$0xff]
      %v724 = vld [vmem:[%s717 + $0x30] sm:$0xff]
      %v725 = vld [vmem:[%s717 + $0x38] sm:$0xff]
      %v726 = vld [vmem:[%s717 + $0x40] sm:$0xff]
      %727 = vmatprep.subr.bf16.mxu0 0
      %728 = vmatpush1.bf16.msra.mxu0 %v718
      %729 = vmatprep.subr.bf16.mxu0 0
      %730 = vmatpush1.bf16.msra.mxu0 %v719
      %731 = vmatprep.subr.bf16.mxu0 0
      %732 = vmatpush1.bf16.msra.mxu0 %v720
      %733 = vmatprep.subr.bf16.mxu0 0
      %734 = vmatpush1.bf16.msra.mxu0 %v721
      %735 = vmatprep.subr.bf16.mxu0 0
      %736 = vmatpush1.bf16.msra.mxu0 %v722
      %737 = vmatprep.subr.bf16.mxu0 0
      %738 = vmatpush1.bf16.msra.mxu0 %v723
      %739 = vmatprep.subr.bf16.mxu0 0
      %740 = vmatpush1.bf16.msra.mxu0 %v724
      %741 = vmatprep.subr.bf16.mxu0 0
      %742 = vmatpush1.bf16.msra.mxu0 %v725
      %743 = vmatprep.subr.bf16.mxu0 0
      %744 = vmatpush1.bf16.msra.mxu0 %v726
      %745 = vmatprep.subr.bf16.mxu0 0
      %746 = vmatpush1.bf16.msra.mxu0 0
      %747 = vmatprep.subr.bf16.mxu0 0
      %748 = vmatpush1.bf16.msra.mxu0 0
      %749 = vmatprep.subr.bf16.mxu0 0
      %750 = vmatpush1.bf16.msra.mxu0 0
      %751 = vmatprep.subr.bf16.mxu0 0
      %752 = vmatpush1.bf16.msra.mxu0 0
      %753 = vmatprep.subr.bf16.mxu0 0
      %754 = vmatpush1.bf16.msra.mxu0 0
      %755 = vmatprep.subr.bf16.mxu0 0
      %756 = vmatpush1.bf16.msra.mxu0 0
      %757 = vmatprep.subr.bf16.mxu0 0
      %758 = vmatpush1.bf16.msra.mxu0 0
      %759 = vmatprep.mubr.bf16.mxu0 %v362
      %760 = vmatmul.mubr.bf16.gmra.mrb[0].mxu0 %v357
      %v761 = vpop.f32.mrb[0].mxu0
      %v762 = vadd.f32 %v343, %v761
      %v763 = vpop.f32.mrb[0].mxu0
      %v764 = vpop.f32.mrb[0].mxu0
      %v765 = vpop.f32.mrb[0].mxu0
      %766 = vdwg.mxu0
      %s767 = scalar_lea.vmem %s144, 56
      %768 = vst [vmem:[%s767] sm:$0xff] %v762
      %s769 = smul.u32 8, %s19
      %p770 = scmp.lt.s32.totalorder %s769, 15
      %s771 = scalar_select %p770, %s769, 15
      %p772 = scmp.lt.s32.totalorder %s18, 0
      %s773 = scalar_select %p772, %s18, 0
      %s774 = sadd.s32 %s773, %s771
      %s775 = smul.addr %s774, 8
      %s776 = scalar_lea.vmem %s3, %s775
      // Predicated region
      $region105: #{unit_tcn_forward.1} parent=27 // pred_check
        %p777 = pneg %p88
      $region106: #{unit_tcn_forward.1} parent=27 // pred_check_branch
        %779 = sbr.rel (%p777) target = $region108
      $region107: #{unit_tcn_forward.1} parent=27 // pred_region
        %s780 = smul.u32 8, %s19
      $region108: #{unit_tcn_forward.1} parent=27 // pred_fallthru
        _
    $region28: #{unit_tcn_forward.1} parent=5 // pred_fallthru
      _
    %p781 = scmp.le.s32.totalorder 2, %s9
    // Predicated region
    $region109: #{unit_tcn_forward.1} parent=5 // pred_check
      %p782 = pneg %p781
    $region110: #{unit_tcn_forward.1} parent=5 // pred_check_branch
      %784 = sbr.rel (%p782) target = $region112
    $region111: #{unit_tcn_forward.1} parent=5 // pred_region
      %s785 = ssub.s32 %s9, 2
      // Predicated region
      $region113: #{unit_tcn_forward.1} parent=111 // pred_check
        %p786 = pneg %p94
      $region114: #{unit_tcn_forward.1} parent=111 // pred_check_branch
        %788 = sbr.rel (%p786) target = $region116
      $region115: #{unit_tcn_forward.1} parent=111 // pred_region
        %s789 = smul.u32 8, %s21
        %p790 = scmp.lt.s32.totalorder %s789, 15
        %s791 = scalar_select %p790, %s789, 15
        %p792 = scmp.lt.s32.totalorder %s20, 0
        %s793 = scalar_select %p792, %s20, 0
        %s794 = sadd.s32 %s793, %s791
        %s795 = smul.addr %s794, 8
        %s796 = scalar_lea.vmem %s3, %s795
      $region116: #{unit_tcn_forward.1} parent=111 // pred_fallthru
        _
    $region112: #{unit_tcn_forward.1} parent=5 // pred_fallthru
      _
  $region6: #{unit_tcn_forward.1} parent=0 // loop_footer
    %s13 = sadd.s32 1, %s9
  $region7: #{unit_tcn_forward.1} parent=0 // loop_footer_branch
    %8 = sbr.rel target = $region3
  $region8: #{unit_tcn_forward.1} parent=0 // loop_exit
    _
  %797 = vsyncmov [#allocation3]
  %s798 = vpop.sfrf %797
  %p799 = scmp.eq.s32.totalorder %s798, 0
  %p800 = pneg %p799
  %802 = shalt.err (%p800)
  %s803 = scalar_lea.sflag [#allocation3], 1
  %804 = vsyncmov %s803
  %s805 = vpop.sfrf %804
  %p806 = scmp.eq.s32.totalorder %s805, 0
  %p807 = pneg %p806
  %809 = shalt.err (%p807)

</llo_original>
